<compile_context>
chip_gen: v7x
topology: tpu7x:2x2x1
jax: 0.10.0
libtpu: 0.0.40
codegen_flags: <defaults>
</compile_context>

<pallas_src>
import jax
import jax.numpy as jnp
from jax.experimental import pallas as pl
from jax.experimental.pallas import tpu as pltpu


def _round_up(x, m):
    return (x + m - 1) // m * m


def _make_fused_quant_conv_relu_kernel(KH, KW, Wp, M_out, C_pad):
    """Kernel: fake-quant once + pack K=KH*KW*C_pad operand + one dot + ReLU."""

    def kernel(qparams_ref, x_ref, w_ref, b_ref, o_ref, xq_ref, packed_ref):
        # qparams_ref: SMEM (3,) = [scale, 1/scale, zero_point]
        s = qparams_ref[0]
        inv_s = qparams_ref[1]
        zp = qparams_ref[2]

        # --- fake-quantize the WHOLE activation tile once (channel-major:
        #     spatial dim on lanes -> lane-dense VPU work). Zero padding maps
        #     to exactly zero, so quantizing padded rows/channels is harmless.
        x = x_ref[0]                                           # (C_pad, S_ext)
        q = jnp.clip(jnp.round(x * inv_s) + zp, -128.0, 127.0)
        xq_ref[...] = (q - zp) * s                             # dequantized

        # --- build the packed (KH*KW*C_pad, M_out) operand with tile-aligned
        #     sublane stores (static lane-offset loads from VMEM scratch).
        for t in range(KH * KW):
            kh, kw = divmod(t, KW)
            off = kh * Wp + kw                                 # static offset
            packed_ref[t * C_pad:(t + 1) * C_pad, :] = xq_ref[:, off:off + M_out]

        # --- single K=72 matmul -> compact (OC, M_out) result, + bias + ReLU.
        y = jnp.dot(w_ref[...], packed_ref[...],
                    preferred_element_type=jnp.float32)        # (OC_pad, M_out)
        o_ref[0] = jnp.maximum(y + b_ref[...], 0.0)            # fused ReLU

    return kernel


def make_quantized_model_forward(weight, bias):
    """weight: (OC, IC, KH, KW) f32; bias: (OC,) f32.

    Packs the fused-conv weights ONCE (hoisted out of the hot forward path)
    and returns a jitted forward(x) for NCHW float inputs.
    """
    OC, IC, KH, KW = weight.shape
    assert KH % 2 == 1 and KW % 2 == 1, "odd kernel ('same' padding) assumed"
    pad = (KH - 1) // 2
    C_pad = _round_up(IC, 8)          # sublane-tile aligned packing pieces
    OC_pad = _round_up(OC, 8)
    K_tot = KH * KW * C_pad

    # --- hoisted weight/bias repacking (done once, closed over) -------------
    # w_packed[oc, t*C_pad + ic] = weight[oc, ic, kh, kw],  t = kh*KW + kw
    w_t = jnp.transpose(weight.astype(jnp.float32), (0, 2, 3, 1))  # (OC,KH,KW,IC)
    w_t = jnp.pad(w_t, ((0, OC_pad - OC), (0, 0), (0, 0), (0, C_pad - IC)))
    w_packed = w_t.reshape(OC_pad, K_tot)
    bias_col = jnp.pad(bias.astype(jnp.float32),
                       (0, OC_pad - OC)).reshape(OC_pad, 1)

    @jax.jit
    def forward(x):
        B, C, H, W = x.shape
        assert C == IC
        Wp = W + 2 * pad                  # padded width
        Hp_ext = H + 2 * pad + 1          # +1 slack row so every tap slice
        S_ext = Hp_ext * Wp               #  [off, off+M_out) stays in range
        M_out = H * Wp                    # width-slack columns sliced off below

        # --- QuantStub observer: per-tensor affine int8 scale / zero-point --
        # TODO(synk): deterministic min/max observer; PyTorch's default QAT
        # FusedMovingAvgObsFakeQuantize (moving averages, quint8 activations,
        # per-channel int8 weights) is not reproduced.
        x_min = jnp.minimum(jnp.min(x), 0.0)
        x_max = jnp.maximum(jnp.max(x), 0.0)
        scale = jnp.maximum((x_max - x_min) / 255.0, 1e-8)
        zp = jnp.clip(jnp.round(-128.0 - x_min / scale), -128.0, 127.0)
        qparams = jnp.stack([scale, 1.0 / scale, zp]).astype(jnp.float32)

        # --- activation layout: NCHW zero-padded & flattened (channel-major);
        #     one activation-sized pass, NO 9x im2col tensor ever hits HBM ----
        x_flat = jnp.pad(
            x.astype(jnp.float32),
            ((0, 0), (0, C_pad - C), (pad, pad + 1), (pad, pad)),
        ).reshape(B, C_pad, S_ext)

        kernel = _make_fused_quant_conv_relu_kernel(KH, KW, Wp, M_out, C_pad)

        flops = 2 * B * H * W * OC * IC * KH * KW          # real MACs
        bytes_accessed = 4 * (x_flat.size + w_packed.size + bias_col.size
                              + B * OC_pad * M_out)

        # TODO(synk): for large resolutions add a row-block grid axis so the
        # output block fits v7x's 64 MiB VMEM and each core gets >=2 steps.
        out = pl.pallas_call(
            kernel,
            out_shape=jax.ShapeDtypeStruct((B, OC_pad, M_out), jnp.float32),
            grid=(B,),
            in_specs=[
                pl.BlockSpec(memory_space=pltpu.SMEM),                 # qparams
                pl.BlockSpec((1, C_pad, S_ext), lambda b: (b, 0, 0)),  # x_flat
                pl.BlockSpec((OC_pad, K_tot), lambda b: (0, 0)),       # weights
                pl.BlockSpec((OC_pad, 1), lambda b: (0, 0)),           # bias
            ],
            out_specs=pl.BlockSpec((1, OC_pad, M_out), lambda b: (b, 0, 0)),
            scratch_shapes=[
                pltpu.VMEM((C_pad, S_ext), jnp.float32),   # quantized acts
                pltpu.VMEM((K_tot, M_out), jnp.float32),   # packed K operand
            ],
            compiler_params=pltpu.CompilerParams(
                dimension_semantics=("parallel",)),
            cost_estimate=pl.CostEstimate(flops=flops, transcendentals=0,
                                          bytes_accessed=bytes_accessed),
        )(qparams, x_flat, w_packed, bias_col)

        # --- compact unpack: reshape + slice only (already NCHW order) -------
        out = out.reshape(B, OC_pad, H, Wp)[:, :OC, :, :W]

        # --- DeQuantStub: identity on float activations -----------------------
        return out

    return forward


def _reference(x, weight, bias):
    """Pure-JAX reference: same fake-quant emulation + conv + bias + ReLU."""
    x_min = jnp.minimum(jnp.min(x), 0.0)
    x_max = jnp.maximum(jnp.max(x), 0.0)
    scale = jnp.maximum((x_max - x_min) / 255.0, 1e-8)
    zp = jnp.clip(jnp.round(-128.0 - x_min / scale), -128.0, 127.0)
    inv_s = 1.0 / scale
    q = jnp.clip(jnp.round(x * inv_s) + zp, -128.0, 127.0)
    xq = (q - zp) * scale
    y = jax.lax.conv_general_dilated(
        xq, weight, window_strides=(1, 1), padding=((1, 1), (1, 1)),
        dimension_numbers=("NCHW", "OIHW", "NCHW"),
        precision=jax.lax.Precision.HIGHEST)
    return jnp.maximum(y + bias[None, :, None, None], 0.0)


if __name__ == "__main__":
    key = jax.random.PRNGKey(0)
    k_x, k_w, k_b = jax.random.split(key, 3)

    B, C, H, W = 2, 4, 16, 16
    OC, KH, KW = 8, 3, 3

    x = jax.random.normal(k_x, (B, C, H, W), dtype=jnp.float32)
    weight = jax.random.normal(k_w, (OC, C, KH, KW), dtype=jnp.float32) * 0.1
    bias = jax.random.normal(k_b, (OC,), dtype=jnp.float32) * 0.1

    fwd = make_quantized_model_forward(weight, bias)   # weights packed once
    out = fwd(x)
    jax.block_until_ready(out)
    assert out.shape == (B, OC, H, W)

    ref = _reference(x, weight, bias)
    max_err = float(jnp.max(jnp.abs(out - ref)))
    assert jnp.allclose(out, ref, rtol=1e-3, atol=1e-3), max_err

    print("KERNEL_OK")
</pallas_src>

<mosaic_0001>
module attributes {stable_mosaic.version = 11 : i64} {
  func.func @kernel(%arg0: i32, %arg1: memref<3xf32, #tpu.memory_space<smem>>, %arg2: memref<1x8x342xf32, #tpu.memory_space<vmem>>, %arg3: memref<8x72xf32, #tpu.memory_space<vmem>>, %arg4: memref<8x1xf32, #tpu.memory_space<vmem>>, %arg5: memref<1x8x288xf32, #tpu.memory_space<vmem>>, %arg6: memref<8x342xf32, #tpu.memory_space<vmem>>, %arg7: memref<72x288xf32, #tpu.memory_space<vmem>>) attributes {dimension_semantics = [#tpu.dimension_semantics<parallel>], iteration_bounds = array<i64: 2>, scalar_prefetch = 0 : i64, scratch_operands = 2 : i64, tpu.core_type = #tpu.core_type<tc>, window_params = [{transform_indices = @transform_0, window_bounds = array<i64: 3>}, {transform_indices = @transform_1, window_bounds = array<i64: 1, 8, 342>}, {pipeline_mode = #tpu.pipeline_mode<synchronous>, transform_indices = @transform_2, window_bounds = array<i64: 8, 72>}, {pipeline_mode = #tpu.pipeline_mode<synchronous>, transform_indices = @transform_3, window_bounds = array<i64: 8, 1>}, {transform_indices = @transform_4, window_bounds = array<i64: 1, 8, 288>}]} {
    %c0 = arith.constant 0 : index
    %0 = memref.load %arg1[%c0] : memref<3xf32, #tpu.memory_space<smem>>
    %c1 = arith.constant 1 : index
    %1 = memref.load %arg1[%c1] : memref<3xf32, #tpu.memory_space<smem>>
    %c2 = arith.constant 2 : index
    %2 = memref.load %arg1[%c2] : memref<3xf32, #tpu.memory_space<smem>>
    %c0_0 = arith.constant 0 : index
    %c0_1 = arith.constant 0 : index
    %c0_2 = arith.constant 0 : index
    %3 = vector.load %arg2[%c0_0, %c0_1, %c0_2] : memref<1x8x342xf32, #tpu.memory_space<vmem>>, vector<1x8x342xf32>
    %4 = vector.shape_cast %3 : vector<1x8x342xf32> to vector<8x342xf32>
    %5 = vector.broadcast %1 : f32 to vector<8x342xf32>
    %6 = arith.mulf %4, %5 : vector<8x342xf32>
    %7 = math.roundeven %6 : vector<8x342xf32>
    %8 = vector.broadcast %2 : f32 to vector<8x342xf32>
    %9 = arith.addf %7, %8 : vector<8x342xf32>
    %cst = arith.constant -1.280000e+02 : f32
    %cst_3 = arith.constant 1.270000e+02 : f32
    %10 = vector.broadcast %cst : f32 to vector<8x342xf32>
    %11 = arith.maximumf %10, %9 : vector<8x342xf32>
    %12 = vector.broadcast %cst_3 : f32 to vector<8x342xf32>
    %13 = arith.minimumf %12, %11 : vector<8x342xf32>
    %14 = vector.broadcast %2 : f32 to vector<8x342xf32>
    %15 = arith.subf %13, %14 : vector<8x342xf32>
    %16 = vector.broadcast %0 : f32 to vector<8x342xf32>
    %17 = arith.mulf %15, %16 : vector<8x342xf32>
    %c0_4 = arith.constant 0 : index
    %c0_5 = arith.constant 0 : index
    %18 = vector.load %arg6[%c0_4, %c0_5] : memref<8x342xf32, #tpu.memory_space<vmem>>, vector<8x342xf32>
    tpu.vector_store %arg6[%c0_4, %c0_5], %17 {strides = array<i32>} : memref<8x342xf32, #tpu.memory_space<vmem>>, vector<8x342xf32>,
    %c0_6 = arith.constant 0 : index
    %c0_7 = arith.constant 0 : index
    %19 = vector.load %arg6[%c0_6, %c0_7] : memref<8x342xf32, #tpu.memory_space<vmem>>, vector<8x288xf32>
    %c0_8 = arith.constant 0 : index
    %c0_9 = arith.constant 0 : index
    %20 = vector.load %arg7[%c0_8, %c0_9] : memref<72x288xf32, #tpu.memory_space<vmem>>, vector<8x288xf32>
    tpu.vector_store %arg7[%c0_8, %c0_9], %19 {strides = array<i32>} : memref<72x288xf32, #tpu.memory_space<vmem>>, vector<8x288xf32>,
    %c0_10 = arith.constant 0 : index
    %c1_11 = arith.constant 1 : index
    %21 = vector.load %arg6[%c0_10, %c1_11] : memref<8x342xf32, #tpu.memory_space<vmem>>, vector<8x288xf32>
    %c8 = arith.constant 8 : index
    %c0_12 = arith.constant 0 : index
    %22 = vector.load %arg7[%c8, %c0_12] : memref<72x288xf32, #tpu.memory_space<vmem>>, vector<8x288xf32>
    tpu.vector_store %arg7[%c8, %c0_12], %21 {strides = array<i32>} : memref<72x288xf32, #tpu.memory_space<vmem>>, vector<8x288xf32>,
    %c0_13 = arith.constant 0 : index
    %c2_14 = arith.constant 2 : index
    %23 = vector.load %arg6[%c0_13, %c2_14] : memref<8x342xf32, #tpu.memory_space<vmem>>, vector<8x288xf32>
    %c16 = arith.constant 16 : index
    %c0_15 = arith.constant 0 : index
    %24 = vector.load %arg7[%c16, %c0_15] : memref<72x288xf32, #tpu.memory_space<vmem>>, vector<8x288xf32>
    tpu.vector_store %arg7[%c16, %c0_15], %23 {strides = array<i32>} : memref<72x288xf32, #tpu.memory_space<vmem>>, vector<8x288xf32>,
    %c0_16 = arith.constant 0 : index
    %c18 = arith.constant 18 : index
    %25 = vector.load %arg6[%c0_16, %c18] : memref<8x342xf32, #tpu.memory_space<vmem>>, vector<8x288xf32>
    %c24 = arith.constant 24 : index
    %c0_17 = arith.constant 0 : index
    %26 = vector.load %arg7[%c24, %c0_17] : memref<72x288xf32, #tpu.memory_space<vmem>>, vector<8x288xf32>
    tpu.vector_store %arg7[%c24, %c0_17], %25 {strides = array<i32>} : memref<72x288xf32, #tpu.memory_space<vmem>>, vector<8x288xf32>,
    %c0_18 = arith.constant 0 : index
    %c19 = arith.constant 19 : index
    %27 = vector.load %arg6[%c0_18, %c19] : memref<8x342xf32, #tpu.memory_space<vmem>>, vector<8x288xf32>
    %c32 = arith.constant 32 : index
    %c0_19 = arith.constant 0 : index
    %28 = vector.load %arg7[%c32, %c0_19] : memref<72x288xf32, #tpu.memory_space<vmem>>, vector<8x288xf32>
    tpu.vector_store %arg7[%c32, %c0_19], %27 {strides = array<i32>} : memref<72x288xf32, #tpu.memory_space<vmem>>, vector<8x288xf32>,
    %c0_20 = arith.constant 0 : index
    %c20 = arith.constant 20 : index
    %29 = vector.load %arg6[%c0_20, %c20] : memref<8x342xf32, #tpu.memory_space<vmem>>, vector<8x288xf32>
    %c40 = arith.constant 40 : index
    %c0_21 = arith.constant 0 : index
    %30 = vector.load %arg7[%c40, %c0_21] : memref<72x288xf32, #tpu.memory_space<vmem>>, vector<8x288xf32>
    tpu.vector_store %arg7[%c40, %c0_21], %29 {strides = array<i32>} : memref<72x288xf32, #tpu.memory_space<vmem>>, vector<8x288xf32>,
    %c0_22 = arith.constant 0 : index
    %c36 = arith.constant 36 : index
    %31 = vector.load %arg6[%c0_22, %c36] : memref<8x342xf32, #tpu.memory_space<vmem>>, vector<8x288xf32>
    %c48 = arith.constant 48 : index
    %c0_23 = arith.constant 0 : index
    %32 = vector.load %arg7[%c48, %c0_23] : memref<72x288xf32, #tpu.memory_space<vmem>>, vector<8x288xf32>
    tpu.vector_store %arg7[%c48, %c0_23], %31 {strides = array<i32>} : memref<72x288xf32, #tpu.memory_space<vmem>>, vector<8x288xf32>,
    %c0_24 = arith.constant 0 : index
    %c37 = arith.constant 37 : index
    %33 = vector.load %arg6[%c0_24, %c37] : memref<8x342xf32, #tpu.memory_space<vmem>>, vector<8x288xf32>
    %c56 = arith.constant 56 : index
    %c0_25 = arith.constant 0 : index
    %34 = vector.load %arg7[%c56, %c0_25] : memref<72x288xf32, #tpu.memory_space<vmem>>, vector<8x288xf32>
    tpu.vector_store %arg7[%c56, %c0_25], %33 {strides = array<i32>} : memref<72x288xf32, #tpu.memory_space<vmem>>, vector<8x288xf32>,
    %c0_26 = arith.constant 0 : index
    %c38 = arith.constant 38 : index
    %35 = vector.load %arg6[%c0_26, %c38] : memref<8x342xf32, #tpu.memory_space<vmem>>, vector<8x288xf32>
    %c64 = arith.constant 64 : index
    %c0_27 = arith.constant 0 : index
    %36 = vector.load %arg7[%c64, %c0_27] : memref<72x288xf32, #tpu.memory_space<vmem>>, vector<8x288xf32>
    tpu.vector_store %arg7[%c64, %c0_27], %35 {strides = array<i32>} : memref<72x288xf32, #tpu.memory_space<vmem>>, vector<8x288xf32>,
    %c0_28 = arith.constant 0 : index
    %c0_29 = arith.constant 0 : index
    %37 = vector.load %arg3[%c0_28, %c0_29] : memref<8x72xf32, #tpu.memory_space<vmem>>, vector<8x72xf32>
    %c0_30 = arith.constant 0 : index
    %c0_31 = arith.constant 0 : index
    %38 = vector.load %arg7[%c0_30, %c0_31] : memref<72x288xf32, #tpu.memory_space<vmem>>, vector<72x288xf32>
    %cst_32 = arith.constant dense<0.000000e+00> : vector<8x288xf32>
    %39 = tpu.matmul %37, %38, %cst_32 {dimension_numbers = #tpu.dot_dimension_numbers<[1], [0], [0], [1], [0, 0, 1, 1], [], []>} : vector<8x72xf32>, vector<72x288xf32>, vector<8x288xf32> -> vector<8x288xf32>
    %c0_33 = arith.constant 0 : index
    %c0_34 = arith.constant 0 : index
    %40 = vector.load %arg4[%c0_33, %c0_34] : memref<8x1xf32, #tpu.memory_space<vmem>>, vector<8x1xf32>
    %41 = vector.broadcast %40 : vector<8x1xf32> to vector<8x288xf32>
    %42 = arith.addf %39, %41 : vector<8x288xf32>
    %cst_35 = arith.constant 0.000000e+00 : f32
    %43 = vector.broadcast %cst_35 : f32 to vector<8x288xf32>
    %44 = arith.maximumf %42, %43 : vector<8x288xf32>
    %c0_36 = arith.constant 0 : index
    %c0_37 = arith.constant 0 : index
    %c0_38 = arith.constant 0 : index
    %45 = vector.load %arg5[%c0_36, %c0_37, %c0_38] : memref<1x8x288xf32, #tpu.memory_space<vmem>>, vector<1x8x288xf32>
    %46 = vector.shape_cast %45 : vector<1x8x288xf32> to vector<8x288xf32>
    %47 = vector.shape_cast %44 : vector<8x288xf32> to vector<1x8x288xf32>
    tpu.vector_store %arg5[%c0_36, %c0_37, %c0_38], %47 {strides = array<i32>} : memref<1x8x288xf32, #tpu.memory_space<vmem>>, vector<1x8x288xf32>,
    return
  }
  func.func @transform_0(%arg0: i32) -> i32 {
    %c0_i32 = arith.constant 0 : i32
    %c0_i32_0 = arith.constant 0 : i32
    return %c0_i32 : i32
  }
  func.func @transform_1(%arg0: i32) -> (i32, i32, i32) {
    %c0_i32 = arith.constant 0 : i32
    %c0_i32_0 = arith.constant 0 : i32
    %c0_i32_1 = arith.constant 0 : i32
    return %arg0, %c0_i32, %c0_i32_0 : i32, i32, i32
  }
  func.func @transform_2(%arg0: i32) -> (i32, i32) {
    %c0_i32 = arith.constant 0 : i32
    %c0_i32_0 = arith.constant 0 : i32
    %c0_i32_1 = arith.constant 0 : i32
    return %c0_i32, %c0_i32_0 : i32, i32
  }
  func.func @transform_3(%arg0: i32) -> (i32, i32) {
    %c0_i32 = arith.constant 0 : i32
    %c0_i32_0 = arith.constant 0 : i32
    %c0_i32_1 = arith.constant 0 : i32
    return %c0_i32, %c0_i32_0 : i32, i32
  }
  func.func @transform_4(%arg0: i32) -> (i32, i32, i32) {
    %c0_i32 = arith.constant 0 : i32
    %c0_i32_0 = arith.constant 0 : i32
    %c0_i32_1 = arith.constant 0 : i32
    return %arg0, %c0_i32, %c0_i32_0 : i32, i32, i32
  }
}

</mosaic_0001>

<llo_original>
// kernel: forward.1
$region0: #{forward.1}
  #allocation0 [shape = 'u32[]', space=smem, size = 0x4, offset = 0x4, fixed_abs, tag = 'smem constant byte address 0x4 - core index']
  #allocation1 [shape = 'u32[144,128]{1,0:T(1,128)}', space=vmem, size = 0x12000, scoped, tag = 'internal scratch']
  #allocation2 [shape = 'f32[8,342]{1,0:T(8,128)}', space=vmem, size = 0x3000, scoped, tag = 'scratch operand']
  #allocation3 [shape = 'f32[72,288]{1,0:T(8,128)}', space=vmem, size = 0x1b000, scoped, tag = 'scratch operand']
  %s0 = inlined_call_operand.vmem [shape: f32[3], index: 0, kind: input, shape index: {}]
  %s1 = inlined_call_operand.vmem [shape: f32[2,8,342], index: 1, kind: input, shape index: {}]
  %s2 = inlined_call_operand.vmem [shape: f32[8,72], index: 2, kind: input, shape index: {}]
  %s3 = inlined_call_operand.vmem [shape: f32[8,1], index: 3, kind: input, shape index: {}]
  %s4 = inlined_call_operand.vmem [shape: f32[2,8,288], index: 4, kind: output, shape index: {}]
  %s5 = sld [smem:[#allocation0]]
  $region53: #{forward.1} parent=0
    _
  %s7 = ssub.s32 1, %s5
  %s8 = scalar_select 0, %s7, %s5
  $region1: #{forward.1} parent=0
    #allocation4 [shape = 'u8[512]{0}', space=smem, size = 0x200, scoped, tag = 'input window, operand 0, single buffered']
    #allocation5 [shape = 's32[2]{0}', space=sflag, size = 0x8, scoped, tag = 'scoped memory for forward.1']
    %9 = vsyncpa [#allocation5], 0
    loop: start=0, step=1, limit=4
    $region2: #{forward.1} parent=1 // loop_pre_header
      _
    $region3: #{forward.1} parent=1 // loop_header
      %s11 = sphi 0, %s15
      %p12 = scmp.ge.s32.totalorder %s11, 4
      %s19 = sphi 0, %s19
      %s21 = sphi 0, %s19
      %s22 = sphi 0, %s21
      %s36 = sphi 0, %s22
      %s42 = sphi 0, %s44
      %s45 = sphi 0, %s42
      %s46 = sphi 0, %s45
      %s62 = sphi 0, %s46
      %s66 = sphi 0, %s66
      %s68 = sphi 0, %s66
      %s69 = sphi 0, %s68
      %s83 = sphi 0, %s69
      %s87 = sphi 0, %s87
      %s89 = sphi 0, %s87
      %s90 = sphi 0, %s89
      %s104 = sphi 0, %s90
      %s110 = sphi 0, %s112
      %s113 = sphi 0, %s110
      %s114 = sphi 0, %s113
      %s130 = sphi 0, %s114
    $region4: #{forward.1} parent=1 // loop_header_branch
      %14 = sbr.rel (%p12) target = $region8
    $region5: #{forward.1} parent=1 // loop_body
      %s16 = ssub.s32 %s11, 1
      %s17 = ssub.s32 %s11, 2
      %s18 = sadd.s32 %s11, 1
      %s20 = sadd.s32 %s19, 1
      %p23 = scmp.eq.s32.totalorder %s11, 1
      %p24 = scmp.ne.s32.totalorder %s19, %s21
      %p25 = scmp.eq.s32.totalorder %s11, 0
      %p26 = por %p24, %p25
      %p27 = scmp.ne.s32.totalorder %s19, %s21
      %p28 = scmp.eq.s32.totalorder %s16, 1
      %p29 = por %p27, %p28
      %p30 = scmp.ne.s32.totalorder %s21, %s22
      %p31 = scmp.eq.s32.totalorder %s16, 0
      %p32 = por %p30, %p31
      %p33 = scmp.ne.s32.totalorder %s21, %s22
      %p34 = scmp.eq.s32.totalorder %s17, 1
      %p35 = por %p33, %p34
      %p37 = scmp.ne.s32.totalorder %s22, %s36
      %p38 = scmp.eq.s32.totalorder %s17, 0
      %p39 = por %p37, %p38
      %s40 = ssub.s32 %s11, %s18
      %p41 = scmp.eq.s32.totalorder %s40, 0
      %s43 = sadd.s32 %s42, 1
      %s44 = scalar_select %p41, %s42, %s43
      %p47 = pneg %p41
      %p48 = scmp.eq.s32.totalorder %s11, 1
      %p49 = por %p47, %p48
      %p50 = scmp.ne.s32.totalorder %s42, %s45
      %p51 = scmp.eq.s32.totalorder %s11, 0
      %p52 = por %p50, %p51
      %p53 = scmp.ne.s32.totalorder %s42, %s45
      %p54 = scmp.eq.s32.totalorder %s16, 1
      %p55 = por %p53, %p54
      %p56 = scmp.ne.s32.totalorder %s45, %s46
      %p57 = scmp.eq.s32.totalorder %s16, 0
      %p58 = por %p56, %p57
      %p59 = scmp.ne.s32.totalorder %s45, %s46
      %p60 = scmp.eq.s32.totalorder %s17, 1
      %p61 = por %p59, %p60
      %p63 = scmp.ne.s32.totalorder %s46, %s62
      %p64 = scmp.eq.s32.totalorder %s17, 0
      %p65 = por %p63, %p64
      %s67 = sadd.s32 %s66, 1
      %p70 = scmp.eq.s32.totalorder %s11, 1
      %p71 = scmp.ne.s32.totalorder %s66, %s68
      %p72 = scmp.eq.s32.totalorder %s11, 0
      %p73 = por %p71, %p72
      %p74 = scmp.ne.s32.totalorder %s66, %s68
      %p75 = scmp.eq.s32.totalorder %s16, 1
      %p76 = por %p74, %p75
      %p77 = scmp.ne.s32.totalorder %s68, %s69
      %p78 = scmp.eq.s32.totalorder %s16, 0
      %p79 = por %p77, %p78
      %p80 = scmp.ne.s32.totalorder %s68, %s69
      %p81 = scmp.eq.s32.totalorder %s17, 1
      %p82 = por %p80, %p81
      %p84 = scmp.ne.s32.totalorder %s69, %s83
      %p85 = scmp.eq.s32.totalorder %s17, 0
      %p86 = por %p84, %p85
      %s88 = sadd.s32 %s87, 1
      %p91 = scmp.eq.s32.totalorder %s11, 1
      %p92 = scmp.ne.s32.totalorder %s87, %s89
      %p93 = scmp.eq.s32.totalorder %s11, 0
      %p94 = por %p92, %p93
      %p95 = scmp.ne.s32.totalorder %s87, %s89
      %p96 = scmp.eq.s32.totalorder %s16, 1
      %p97 = por %p95, %p96
      %p98 = scmp.ne.s32.totalorder %s89, %s90
      %p99 = scmp.eq.s32.totalorder %s16, 0
      %p100 = por %p98, %p99
      %p101 = scmp.ne.s32.totalorder %s89, %s90
      %p102 = scmp.eq.s32.totalorder %s17, 1
      %p103 = por %p101, %p102
      %p105 = scmp.ne.s32.totalorder %s90, %s104
      %p106 = scmp.eq.s32.totalorder %s17, 0
      %p107 = por %p105, %p106
      %s108 = ssub.s32 %s11, %s18
      %p109 = scmp.eq.s32.totalorder %s108, 0
      %s111 = sadd.s32 %s110, 1
      %s112 = scalar_select %p109, %s110, %s111
      %p115 = pneg %p109
      %p116 = scmp.eq.s32.totalorder %s11, 1
      %p117 = por %p115, %p116
      %p118 = scmp.ne.s32.totalorder %s110, %s113
      %p119 = scmp.eq.s32.totalorder %s11, 0
      %p120 = por %p118, %p119
      %p121 = scmp.ne.s32.totalorder %s110, %s113
      %p122 = scmp.eq.s32.totalorder %s16, 1
      %p123 = por %p121, %p122
      %p124 = scmp.ne.s32.totalorder %s113, %s114
      %p125 = scmp.eq.s32.totalorder %s16, 0
      %p126 = por %p124, %p125
      %p127 = scmp.ne.s32.totalorder %s113, %s114
      %p128 = scmp.eq.s32.totalorder %s17, 1
      %p129 = por %p127, %p128
      %p131 = scmp.ne.s32.totalorder %s114, %s130
      %p132 = scmp.eq.s32.totalorder %s17, 0
      %p133 = por %p131, %p132
      %p134 = scmp.le.s32.totalorder 1, %s11
      %p135 = scmp.lt.s32.totalorder %s11, 3
      %p136 = pnand %p134, %p135
      %p137 = pneg %p136
      // Predicated region
      $region9: #{forward.1} parent=5 // pred_check
        _
      $region10: #{forward.1} parent=5 // pred_check_branch
        %139 = sbr.rel (%p136) target = $region12
      $region11: #{forward.1} parent=5 // pred_region
        %s140 = ssub.s32 %s11, 1
        // Predicated region
        $region13: #{forward.1} parent=11 // pred_check
          %p141 = pneg %p32
        $region14: #{forward.1} parent=11 // pred_check_branch
          %143 = sbr.rel (%p141) target = $region16
        $region15: #{forward.1} parent=11 // pred_region
          %s145 = ssub.s32 16, 16
          %146 = vsyncadd [#allocation5], %s145
          %s148 = sshll.u32 %s0, 4
          %s149 = int_to_ptr.vmem [resolvable:$true] %s148
          %151 = dma.vmem_to_smem %s149, 16, [#allocation4], [#allocation5]
        $region16: #{forward.1} parent=11 // pred_fallthru
          _
        // Predicated region
        $region17: #{forward.1} parent=11 // pred_check
          %p152 = pneg %p79
        $region18: #{forward.1} parent=11 // pred_check_branch
          %154 = sbr.rel (%p152) target = $region20
        $region19: #{forward.1} parent=11 // pred_region
          _
        $region20: #{forward.1} parent=11 // pred_fallthru
          _
        // Predicated region
        $region21: #{forward.1} parent=11 // pred_check
          %p155 = pneg %p100
        $region22: #{forward.1} parent=11 // pred_check_branch
          %157 = sbr.rel (%p155) target = $region24
        $region23: #{forward.1} parent=11 // pred_region
          _
        $region24: #{forward.1} parent=11 // pred_fallthru
          _
      $region12: #{forward.1} parent=5 // pred_fallthru
        _
      %p158 = scmp.lt.s32.totalorder %s11, 2
      // Predicated region
      $region25: #{forward.1} parent=5 // pred_check
        %p159 = pneg %p158
      $region26: #{forward.1} parent=5 // pred_check_branch
        %161 = sbr.rel (%p159) target = $region28
      $region27: #{forward.1} parent=5 // pred_region
        // Predicated region
        $region29: #{forward.1} parent=27 // pred_check
          %p162 = pneg %p52
        $region30: #{forward.1} parent=27 // pred_check_branch
          %164 = sbr.rel (%p162) target = $region32
        $region31: #{forward.1} parent=27 // pred_region
          %p165 = scmp.lt.s32.totalorder %s11, 1
          %s166 = scalar_select %p165, %s11, 1
          %s167 = smul.addr %s166, 3
          %s168 = smul.addr %s167, 8
          %s169 = scalar_lea.vmem %s1, %s168
        $region32: #{forward.1} parent=27 // pred_fallthru
          _
      $region28: #{forward.1} parent=5 // pred_fallthru
        _
      %p170 = scmp.le.s32.totalorder 1, %s11
      %p171 = scmp.lt.s32.totalorder %s11, 3
      %p172 = pnand %p170, %p171
      %p173 = pneg %p172
      // Predicated region
      $region33: #{forward.1} parent=5 // pred_check
        _
      $region34: #{forward.1} parent=5 // pred_check_branch
        %175 = sbr.rel (%p172) target = $region36
      $region35: #{forward.1} parent=5 // pred_region
        %s176 = ssub.s32 %s11, 1
        // Predicated region
        $region37: #{forward.1} parent=35 // pred_check
          %p177 = pneg %p32
        $region38: #{forward.1} parent=35 // pred_check_branch
          %179 = sbr.rel (%p177) target = $region40
        $region39: #{forward.1} parent=35 // pred_region
          %180 = dma.done [#allocation5], 16
        $region40: #{forward.1} parent=35 // pred_fallthru
          _
        %181 = sfence
        %p182 = pneg %p32
        %p183 = pneg %p29
        %p184 = scmp.lt.s32.totalorder %s16, 1
        %s185 = scalar_select %p184, %s16, 1
        %s186 = smul.addr %s185, 3
        %s187 = smul.addr %s186, 8
        %s188 = scalar_lea.vmem %s1, %s187
        %p189 = pneg %p58
        %p190 = pneg %p55
        %p191 = pneg %p79
        %p192 = pneg %p76
        %p193 = pneg %p100
        %p194 = pneg %p97
        %p195 = pneg %p126
        %p196 = pneg %p123
        %p197 = scmp.lt.s32.totalorder %s16, 1
        %s198 = scalar_select %p197, %s16, 1
        %s199 = smul.addr %s198, 3
        %s200 = smul.addr %s199, 8
        %s201 = scalar_lea.vmem %s4, %s200
        %p202 = scmp.lt.s32.totalorder %s16, 1
        %s203 = scalar_select %p202, %s16, 1
        %s204 = smul.addr %s203, 3
        %s205 = smul.addr %s204, 8
        %s206 = scalar_lea.vmem %s1, %s205
        %p207 = scmp.lt.s32.totalorder %s16, 1
        %s208 = scalar_select %p207, %s16, 1
        %s209 = smul.addr %s208, 3
        %s210 = smul.addr %s209, 8
        %s211 = scalar_lea.vmem %s4, %s210
        %s212 = sld [smem:[#allocation4]]
        %s213 = sld [smem:[#allocation4 + $0x1]]
        %s214 = sld [smem:[#allocation4 + $0x2]]
        %v215 = vld [vmem:[%s206] sm:$0xff]
        %v216 = vld [vmem:[%s206 + $0x8] sm:$0xff]
        %v217 = vld [vmem:[%s206 + $0x10] sm:$0xff]
        %v218 = vstv %s213
        %v219 = vmul.f32 %v215, %v218
        %v220 = vmul.f32 %v216, %v218
        %v221 = vmul.f32 %v217, %v218
        %v222 = vround.ne.pseudo %v219
        %v223 = vround.ne.pseudo %v220
        %v224 = vround.ne.pseudo %v221
        %v225 = vstv %s214
        %v226 = vadd.f32 %v222, %v225
        %v227 = vadd.f32 %v223, %v225
        %v228 = vadd.f32 %v224, %v225
        %v229 = vmax.f32 %v226, -128.0
        %v230 = vmax.f32 %v227, -128.0
        %v231 = vmax.f32 %v228, -128.0
        %v232 = vmin.f32 %v229, 127.0
        %v233 = vmin.f32 %v230, 127.0
        %v234 = vmin.f32 %v231, 127.0
        %v235 = vsub.f32 %v232, %v225
        %v236 = vsub.f32 %v233, %v225
        %v237 = vsub.f32 %v234, %v225
        %v238 = vstv %s212
        %v239 = vmul.f32 %v235, %v238
        %v240 = vmul.f32 %v236, %v238
        %v241 = vmul.f32 %v237, %v238
        %242 = vst [vmem:[#allocation2] sm:$0xff] %v239
        %243 = vst [vmem:[#allocation2 + $0x8] sm:$0xff] %v240
        %vm244 = vcmask 703488
        %245 = vst.msk [vmem:[#allocation2 + $0x10] sm:$0xff] %vm244, %v241
        %v246 = vld [vmem:[#allocation2] sm:$0xff]
        %v247 = vld [vmem:[#allocation2 + $0x8] sm:$0xff]
        %v248 = vld [vmem:[#allocation2 + $0x10] sm:$0xff]
        %249 = vst [vmem:[#allocation3] sm:$0xff] %v246
        %250 = vst [vmem:[#allocation3 + $0x8] sm:$0xff] %v247
        %vm251 = vcmask 261120
        %252 = vst.msk [vmem:[#allocation3 + $0x10] sm:$0xff] %vm251, %v248
        %v253 = vld [vmem:[#allocation2] sm:$0xff]
        %v254 = vld [vmem:[#allocation2 + $0x8] sm:$0xff]
        %v255 = vld [vmem:[#allocation2 + $0x10] sm:$0xff]
        %259 = vrot.lane.b32.xlu0 %v253, 127
        %v260 = vpop.permute.xlu0 %259
        %261 = vrot.lane.b32.xlu0 %v254, 127
        %v262 = vpop.permute.xlu0 %261
        %263 = vrot.lane.b32.xlu0 %v255, 127
        %v264 = vpop.permute.xlu0 %263
        %vm265 = vcmask 1039360
        %v266 = vsel %vm265, %v260, %v262
        %v267 = vsel %vm265, %v262, %v264
        %271 = vst [vmem:[#allocation3 + $0x18] sm:$0xff] %v266
        %272 = vst [vmem:[#allocation3 + $0x20] sm:$0xff] %v267
        %273 = vst.msk [vmem:[#allocation3 + $0x28] sm:$0xff] %vm251, %v264
        %v274 = vld [vmem:[#allocation2] sm:$0xff]
        %v275 = vld [vmem:[#allocation2 + $0x8] sm:$0xff]
        %v276 = vld [vmem:[#allocation2 + $0x10] sm:$0xff]
        %280 = vrot.lane.b32.xlu0 %v274, 126
        %v281 = vpop.permute.xlu0 %280
        %282 = vrot.lane.b32.xlu0 %v275, 126
        %v283 = vpop.permute.xlu0 %282
        %284 = vrot.lane.b32.xlu0 %v276, 126
        %v285 = vpop.permute.xlu0 %284
        %vm286 = vcmask 1031168
        %v287 = vsel %vm286, %v281, %v283
        %v288 = vsel %vm286, %v283, %v285
        %292 = vst [vmem:[#allocation3 + $0x30] sm:$0xff] %v287
        %293 = vst [vmem:[#allocation3 + $0x38] sm:$0xff] %v288
        %294 = vst.msk [vmem:[#allocation3 + $0x40] sm:$0xff] %vm251, %v285
        %v295 = vld [vmem:[#allocation2] sm:$0xff]
        %v296 = vld [vmem:[#allocation2 + $0x8] sm:$0xff]
        %v297 = vld [vmem:[#allocation2 + $0x10] sm:$0xff]
        %301 = vrot.lane.b32.xlu0 %v295, 110
        %v302 = vpop.permute.xlu0 %301
        %303 = vrot.lane.b32.xlu0 %v296, 110
        %v304 = vpop.permute.xlu0 %303
        %305 = vrot.lane.b32.xlu0 %v297, 110
        %v306 = vpop.permute.xlu0 %305
        %vm307 = vcmask 900096
        %v308 = vsel %vm307, %v302, %v304
        %v309 = vsel %vm307, %v304, %v306
        %313 = vst [vmem:[#allocation3 + $0x48] sm:$0xff] %v308
        %314 = vst [vmem:[#allocation3 + $0x50] sm:$0xff] %v309
        %315 = vst.msk [vmem:[#allocation3 + $0x58] sm:$0xff] %vm251, %v306
        %v316 = vld [vmem:[#allocation2] sm:$0xff]
        %v317 = vld [vmem:[#allocation2 + $0x8] sm:$0xff]
        %v318 = vld [vmem:[#allocation2 + $0x10] sm:$0xff]
        %322 = vrot.lane.b32.xlu0 %v316, 109
        %v323 = vpop.permute.xlu0 %322
        %324 = vrot.lane.b32.xlu0 %v317, 109
        %v325 = vpop.permute.xlu0 %324
        %326 = vrot.lane.b32.xlu0 %v318, 109
        %v327 = vpop.permute.xlu0 %326
        %vm328 = vcmask 891904
        %v329 = vsel %vm328, %v323, %v325
        %v330 = vsel %vm328, %v325, %v327
        %334 = vst [vmem:[#allocation3 + $0x60] sm:$0xff] %v329
        %335 = vst [vmem:[#allocation3 + $0x68] sm:$0xff] %v330
        %336 = vst.msk [vmem:[#allocation3 + $0x70] sm:$0xff] %vm251, %v327
        %v337 = vld [vmem:[#allocation2] sm:$0xff]
        %v338 = vld [vmem:[#allocation2 + $0x8] sm:$0xff]
        %v339 = vld [vmem:[#allocation2 + $0x10] sm:$0xff]
        %343 = vrot.lane.b32.xlu0 %v337, 108
        %v344 = vpop.permute.xlu0 %343
        %345 = vrot.lane.b32.xlu0 %v338, 108
        %v346 = vpop.permute.xlu0 %345
        %347 = vrot.lane.b32.xlu0 %v339, 108
        %v348 = vpop.permute.xlu0 %347
        %vm349 = vcmask 883712
        %v350 = vsel %vm349, %v344, %v346
        %v351 = vsel %vm349, %v346, %v348
        %355 = vst [vmem:[#allocation3 + $0x78] sm:$0xff] %v350
        %356 = vst [vmem:[#allocation3 + $0x80] sm:$0xff] %v351
        %357 = vst.msk [vmem:[#allocation3 + $0x88] sm:$0xff] %vm251, %v348
        %v358 = vld [vmem:[#allocation2] sm:$0xff]
        %v359 = vld [vmem:[#allocation2 + $0x8] sm:$0xff]
        %v360 = vld [vmem:[#allocation2 + $0x10] sm:$0xff]
        %364 = vrot.lane.b32.xlu0 %v358, 92
        %v365 = vpop.permute.xlu0 %364
        %366 = vrot.lane.b32.xlu0 %v359, 92
        %v367 = vpop.permute.xlu0 %366
        %368 = vrot.lane.b32.xlu0 %v360, 92
        %v369 = vpop.permute.xlu0 %368
        %vm370 = vcmask 752640
        %v371 = vsel %vm370, %v365, %v367
        %v372 = vsel %vm370, %v367, %v369
        %376 = vst [vmem:[#allocation3 + $0x90] sm:$0xff] %v371
        %377 = vst [vmem:[#allocation3 + $0x98] sm:$0xff] %v372
        %378 = vst.msk [vmem:[#allocation3 + $0xa0] sm:$0xff] %vm251, %v369
        %v379 = vld [vmem:[#allocation2] sm:$0xff]
        %v380 = vld [vmem:[#allocation2 + $0x8] sm:$0xff]
        %v381 = vld [vmem:[#allocation2 + $0x10] sm:$0xff]
        %385 = vrot.lane.b32.xlu0 %v379, 91
        %v386 = vpop.permute.xlu0 %385
        %387 = vrot.lane.b32.xlu0 %v380, 91
        %v388 = vpop.permute.xlu0 %387
        %389 = vrot.lane.b32.xlu0 %v381, 91
        %v390 = vpop.permute.xlu0 %389
        %vm391 = vcmask 744448
        %v392 = vsel %vm391, %v386, %v388
        %v393 = vsel %vm391, %v388, %v390
        %397 = vst [vmem:[#allocation3 + $0xa8] sm:$0xff] %v392
        %398 = vst [vmem:[#allocation3 + $0xb0] sm:$0xff] %v393
        %399 = vst.msk [vmem:[#allocation3 + $0xb8] sm:$0xff] %vm251, %v390
        %v400 = vld [vmem:[#allocation2] sm:$0xff]
        %v401 = vld [vmem:[#allocation2 + $0x8] sm:$0xff]
        %v402 = vld [vmem:[#allocation2 + $0x10] sm:$0xff]
        %406 = vrot.lane.b32.xlu0 %v400, 90
        %v407 = vpop.permute.xlu0 %406
        %408 = vrot.lane.b32.xlu0 %v401, 90
        %v409 = vpop.permute.xlu0 %408
        %410 = vrot.lane.b32.xlu0 %v402, 90
        %v411 = vpop.permute.xlu0 %410
        %vm412 = vcmask 736256
        %v413 = vsel %vm412, %v407, %v409
        %v414 = vsel %vm412, %v409, %v411
        %418 = vst [vmem:[#allocation3 + $0xc0] sm:$0xff] %v413
        %419 = vst [vmem:[#allocation3 + $0xc8] sm:$0xff] %v414
        %420 = vst.msk [vmem:[#allocation3 + $0xd0] sm:$0xff] %vm251, %v411
        %v421 = vld [vmem:[%s2] sm:$0xff]
        %v422 = vld [vmem:[#allocation3] sm:$0xff]
        %v423 = vld [vmem:[#allocation3 + $0x8] sm:$0xff]
        %v424 = vld [vmem:[#allocation3 + $0x10] sm:$0xff]
        %v425 = vld [vmem:[#allocation3 + $0x18] sm:$0xff]
        %v426 = vld [vmem:[#allocation3 + $0x20] sm:$0xff]
        %v427 = vld [vmem:[#allocation3 + $0x28] sm:$0xff]
        %v428 = vld [vmem:[#allocation3 + $0x30] sm:$0xff]
        %v429 = vld [vmem:[#allocation3 + $0x38] sm:$0xff]
        %v430 = vld [vmem:[#allocation3 + $0x40] sm:$0xff]
        %v431 = vld [vmem:[#allocation3 + $0x48] sm:$0xff]
        %v432 = vld [vmem:[#allocation3 + $0x50] sm:$0xff]
        %v433 = vld [vmem:[#allocation3 + $0x58] sm:$0xff]
        %v434 = vld [vmem:[#allocation3 + $0x60] sm:$0xff]
        %v435 = vld [vmem:[#allocation3 + $0x68] sm:$0xff]
        %v436 = vld [vmem:[#allocation3 + $0x70] sm:$0xff]
        %v437 = vld [vmem:[#allocation3 + $0x78] sm:$0xff]
        %v438 = vld [vmem:[#allocation3 + $0x80] sm:$0xff]
        %v439 = vld [vmem:[#allocation3 + $0x88] sm:$0xff]
        %v440 = vld [vmem:[#allocation3 + $0x90] sm:$0xff]
        %v441 = vld [vmem:[#allocation3 + $0x98] sm:$0xff]
        %v442 = vld [vmem:[#allocation3 + $0xa0] sm:$0xff]
        %v443 = vld [vmem:[#allocation3 + $0xa8] sm:$0xff]
        %v444 = vld [vmem:[#allocation3 + $0xb0] sm:$0xff]
        %v445 = vld [vmem:[#allocation3 + $0xb8] sm:$0xff]
        %v446 = vld [vmem:[#allocation3 + $0xc0] sm:$0xff]
        %v447 = vld [vmem:[#allocation3 + $0xc8] sm:$0xff]
        %v448 = vld [vmem:[#allocation3 + $0xd0] sm:$0xff]
        %v449 = vld [vmem:[%s3] sm:$0xff]
        %451 = vset.pattern.permute.xlu0 0
        %452 = vperm.xlu0 %451, %v449
        %v453 = vpop.permute.xlu0 %452
        %vm455 = vcmask 588800
        %v457 = vsel %vm455, %v421, 0
        %459 = vmatprep.subr.mxu0 %v423
        %460 = vmatpush1.msra.mxu0 %v422
        %461 = vmatprep.subr.mxu0 %v426
        %462 = vmatpush1.msra.mxu0 %v425
        %463 = vmatprep.subr.mxu0 %v429
        %464 = vmatpush1.msra.mxu0 %v428
        %465 = vmatprep.subr.mxu0 %v432
        %466 = vmatpush1.msra.mxu0 %v431
        %467 = vmatprep.subr.mxu0 %v435
        %468 = vmatpush1.msra.mxu0 %v434
        %469 = vmatprep.subr.mxu0 %v438
        %470 = vmatpush1.msra.mxu0 %v437
        %471 = vmatprep.subr.mxu0 %v441
        %472 = vmatpush1.msra.mxu0 %v440
        %473 = vmatprep.subr.mxu0 %v444
        %474 = vmatpush1.msra.mxu0 %v443
        %475 = vmatprep.subr.mxu0 %v447
        %476 = vmatpush1.msra.mxu0 %v446
        %477 = vmatprep.subr.mxu0 0.0
        %478 = vmatpush1.msra.mxu0 0.0
        %479 = vmatprep.subr.mxu0 0.0
        %480 = vmatpush1.msra.mxu0 0.0
        %481 = vmatprep.subr.mxu0 0.0
        %482 = vmatpush1.msra.mxu0 0.0
        %483 = vmatprep.subr.mxu0 0.0
        %484 = vmatpush1.msra.mxu0 0.0
        %485 = vmatprep.subr.mxu0 0.0
        %486 = vmatpush1.msra.mxu0 0.0
        %487 = vmatprep.subr.mxu0 0.0
        %488 = vmatpush1.msra.mxu0 0.0
        %489 = vmatprep.subr.mxu0 0.0
        %490 = vmatpush1.msra.mxu0 0.0
        %491 = vmatprep.subr.mxu0 0.0
        %492 = vmatpush1.msra.mxu0 0.0
        %493 = vmatprep.subr.mxu0 0.0
        %494 = vmatpush1.msra.mxu0 0.0
        %495 = vmatprep.subr.mxu0 0.0
        %496 = vmatpush1.msra.mxu0 0.0
        %497 = vmatprep.subr.mxu0 0.0
        %498 = vmatpush1.msra.mxu0 0.0
        %499 = vmatprep.subr.mxu0 0.0
        %500 = vmatpush1.msra.mxu0 0.0
        %501 = vmatprep.subr.mxu0 0.0
        %502 = vmatpush1.msra.mxu0 0.0
        %503 = vmatprep.subr.mxu0 0.0
        %504 = vmatpush1.msra.mxu0 0.0
        %505 = vmatprep.subr.mxu0 0.0
        %506 = vmatpush1.msra.mxu0 0.0
        %507 = vmatprep.subr.mxu0 0.0
        %508 = vmatpush1.msra.mxu0 0.0
        %509 = vmatprep.subr.mxu0 0.0
        %510 = vmatpush1.msra.mxu0 0.0
        %511 = vmatprep.subr.mxu0 0.0
        %512 = vmatpush1.msra.mxu0 0.0
        %513 = vmatprep.subr.mxu0 0.0
        %514 = vmatpush1.msra.mxu0 0.0
        %515 = vmatprep.subr.mxu0 0.0
        %516 = vmatpush1.msra.mxu0 0.0
        %517 = vmatprep.subr.mxu0 0.0
        %518 = vmatpush1.msra.mxu0 0.0
        %519 = vmatprep.subr.mxu0 0.0
        %520 = vmatpush1.msra.mxu0 0.0
        %521 = vmatprep.subr.mxu0 0.0
        %522 = vmatpush1.msra.mxu0 0.0
        %523 = vmatprep.mubr.f32.mxu0 0.0
        %524 = vmatmul.mubr.f32.gmra.mrb[0].mxu0 %v457
        %v525 = vpop.f32.mrb[0].mxu0
        %v526 = vadd.f32 %v453, %v525
        %v527 = vpop.f32.mrb[0].mxu0
        %v528 = vadd.f32 %v453, %v527
        %529 = vdwg.mxu0
        %530 = vmatprep.subr.mxu0 0.0
        %531 = vmatpush1.msra.mxu0 %v424
        %532 = vmatprep.subr.mxu0 0.0
        %533 = vmatpush1.msra.mxu0 %v427
        %534 = vmatprep.subr.mxu0 0.0
        %535 = vmatpush1.msra.mxu0 %v430
        %536 = vmatprep.subr.mxu0 0.0
        %537 = vmatpush1.msra.mxu0 %v433
        %538 = vmatprep.subr.mxu0 0.0
        %539 = vmatpush1.msra.mxu0 %v436
        %540 = vmatprep.subr.mxu0 0.0
        %541 = vmatpush1.msra.mxu0 %v439
        %542 = vmatprep.subr.mxu0 0.0
        %543 = vmatpush1.msra.mxu0 %v442
        %544 = vmatprep.subr.mxu0 0.0
        %545 = vmatpush1.msra.mxu0 %v445
        %546 = vmatprep.subr.mxu0 0.0
        %547 = vmatpush1.msra.mxu0 %v448
        %548 = vmatprep.subr.mxu0 0.0
        %549 = vmatpush1.msra.mxu0 0.0
        %550 = vmatprep.subr.mxu0 0.0
        %551 = vmatpush1.msra.mxu0 0.0
        %552 = vmatprep.subr.mxu0 0.0
        %553 = vmatpush1.msra.mxu0 0.0
        %554 = vmatprep.subr.mxu0 0.0
        %555 = vmatpush1.msra.mxu0 0.0
        %556 = vmatprep.subr.mxu0 0.0
        %557 = vmatpush1.msra.mxu0 0.0
        %558 = vmatprep.subr.mxu0 0.0
        %559 = vmatpush1.msra.mxu0 0.0
        %560 = vmatprep.subr.mxu0 0.0
        %561 = vmatpush1.msra.mxu0 0.0
        %562 = vmatprep.subr.mxu0 0.0
        %563 = vmatpush1.msra.mxu0 0.0
        %564 = vmatprep.subr.mxu0 0.0
        %565 = vmatpush1.msra.mxu0 0.0
        %566 = vmatprep.subr.mxu0 0.0
        %567 = vmatpush1.msra.mxu0 0.0
        %568 = vmatprep.subr.mxu0 0.0
        %569 = vmatpush1.msra.mxu0 0.0
        %570 = vmatprep.subr.mxu0 0.0
        %571 = vmatpush1.msra.mxu0 0.0
        %572 = vmatprep.subr.mxu0 0.0
        %573 = vmatpush1.msra.mxu0 0.0
        %574 = vmatprep.subr.mxu0 0.0
        %575 = vmatpush1.msra.mxu0 0.0
        %576 = vmatprep.subr.mxu0 0.0
        %577 = vmatpush1.msra.mxu0 0.0
        %578 = vmatprep.subr.mxu0 0.0
        %579 = vmatpush1.msra.mxu0 0.0
        %580 = vmatprep.subr.mxu0 0.0
        %581 = vmatpush1.msra.mxu0 0.0
        %582 = vmatprep.subr.mxu0 0.0
        %583 = vmatpush1.msra.mxu0 0.0
        %584 = vmatprep.subr.mxu0 0.0
        %585 = vmatpush1.msra.mxu0 0.0
        %586 = vmatprep.subr.mxu0 0.0
        %587 = vmatpush1.msra.mxu0 0.0
        %588 = vmatprep.subr.mxu0 0.0
        %589 = vmatpush1.msra.mxu0 0.0
        %590 = vmatprep.subr.mxu0 0.0
        %591 = vmatpush1.msra.mxu0 0.0
        %592 = vmatprep.subr.mxu0 0.0
        %593 = vmatpush1.msra.mxu0 0.0
        %594 = vmatprep.mubr.f32.mxu0 0.0
        %595 = vmatmul.mubr.f32.gmra.mrb[0].mxu0 %v457
        %v596 = vpop.f32.mrb[0].mxu0
        %v597 = vadd.f32 %v453, %v596
        %v598 = vpop.f32.mrb[0].mxu0
        %599 = vdwg.mxu0
        %v600 = vmax.f32 %v526, 0.0
        %v601 = vmax.f32 %v528, 0.0
        %v602 = vmax.f32 %v597, 0.0
        %603 = vst [vmem:[%s211] sm:$0xff] %v600
        %604 = vst [vmem:[%s211 + $0x8] sm:$0xff] %v601
        %605 = vst.msk [vmem:[%s211 + $0x10] sm:$0xff] %vm251, %v602
        %p606 = scmp.lt.s32.totalorder %s16, 1
        %s607 = scalar_select %p606, %s16, 1
        %s608 = smul.addr %s607, 3
        %s609 = smul.addr %s608, 8
        %s610 = scalar_lea.vmem %s4, %s609
        // Predicated region
        $region41: #{forward.1} parent=35 // pred_check
          %p611 = pneg %p123
        $region42: #{forward.1} parent=35 // pred_check_branch
          %613 = sbr.rel (%p611) target = $region44
        $region43: #{forward.1} parent=35 // pred_region
          _
        $region44: #{forward.1} parent=35 // pred_fallthru
          _
      $region36: #{forward.1} parent=5 // pred_fallthru
        _
      %p614 = scmp.le.s32.totalorder 2, %s11
      // Predicated region
      $region45: #{forward.1} parent=5 // pred_check
        %p615 = pneg %p614
      $region46: #{forward.1} parent=5 // pred_check_branch
        %617 = sbr.rel (%p615) target = $region48
      $region47: #{forward.1} parent=5 // pred_region
        %s618 = ssub.s32 %s11, 2
        // Predicated region
        $region49: #{forward.1} parent=47 // pred_check
          %p619 = pneg %p129
        $region50: #{forward.1} parent=47 // pred_check_branch
          %621 = sbr.rel (%p619) target = $region52
        $region51: #{forward.1} parent=47 // pred_region
          %p622 = scmp.lt.s32.totalorder %s17, 1
          %s623 = scalar_select %p622, %s17, 1
          %s624 = smul.addr %s623, 3
          %s625 = smul.addr %s624, 8
          %s626 = scalar_lea.vmem %s4, %s625
        $region52: #{forward.1} parent=47 // pred_fallthru
          _
      $region48: #{forward.1} parent=5 // pred_fallthru
        _
    $region6: #{forward.1} parent=1 // loop_footer
      %s15 = sadd.s32 1, %s11
    $region7: #{forward.1} parent=1 // loop_footer_branch
      %10 = sbr.rel target = $region3
    $region8: #{forward.1} parent=1 // loop_exit
      _
    %627 = vsyncpa [#allocation5], 1
    %s628 = scalar_lea.sflag [#allocation5], 1
    %629 = vsyncpa %s628, 1

</llo_original>
